<compile_context>
chip_gen: v7x
topology: tpu7x:2x2x1
jax: 0.10.0
libtpu: 0.0.40
codegen_flags: <defaults>
</compile_context>

<pallas_src>
import functools

import jax
import jax.numpy as jnp
from jax.experimental import pallas as pl
from jax.experimental.pallas import tpu as pltpu


_DEFAULT_TILE_BYTES = 8 * 1024 * 1024   # target logits-tile size (per buffer)
_VMEM_LIMIT_BYTES = 48 * 1024 * 1024    # < 64 MiB (v7x physical), << 128 MiB (v5e/v6e)


def _round_up(x, m):
    return (x + m - 1) // m * m


def _ce_onepass_kernel(logits_ref, target_ref, loss_ref):
    """One-pass per-row CE; the whole class axis is resident in one tile."""
    x = logits_ref[...].astype(jnp.float32)                       # (TB, C)
    t = target_ref[...]                                           # (TB, 1) int32
    col = jax.lax.broadcasted_iota(jnp.int32, x.shape, 1)
    m = jnp.max(x, axis=-1, keepdims=True)
    sum_exp = jnp.sum(jnp.exp(x - m), axis=-1, keepdims=True)
    # Target logit via one-hot select (no dynamic gather needed).
    tgt = jnp.sum(jnp.where(col == t, x, 0.0), axis=-1, keepdims=True)
    loss_ref[...] = (m + jnp.log(sum_exp) - tgt).astype(loss_ref.dtype)


def _ce_streaming_kernel(logits_ref, target_ref, loss_ref,
                         m_sc, l_sc, tgt_sc, *, num_classes, tile_c, mask_tail):
    """Streaming per-row CE with online logsumexp over class tiles (large C).

    Grid: (batch_tiles, class_tiles); class axis is the last ("arbitrary")
    reduction axis.  Running max / sum-exp / target-logit live in VMEM scratch.
    """
    k = pl.program_id(1)

    @pl.when(k == 0)
    def _():
        m_sc[...] = jnp.full_like(m_sc, -jnp.inf)
        l_sc[...] = jnp.zeros_like(l_sc)
        tgt_sc[...] = jnp.zeros_like(tgt_sc)

    x_raw = logits_ref[...].astype(jnp.float32)                   # (TB, TC)
    t = target_ref[...]                                           # (TB, 1)

    # Loop-invariant local iota; shift the scalars, not the iota.
    col_local = jax.lax.broadcasted_iota(jnp.int32, x_raw.shape, 1)

    # Target-logit contribution of this class tile — uses the PRE-mask logits
    # so masked tail lanes can never inject -inf (valid t < num_classes anyway).
    t_local = t - tile_c * k
    tgt_sc[...] = tgt_sc[...] + jnp.sum(
        jnp.where(col_local == t_local, x_raw, 0.0), axis=-1, keepdims=True)

    if mask_tail:
        x = jnp.where(col_local < (num_classes - tile_c * k), x_raw, -jnp.inf)
    else:
        x = x_raw

    # Online logsumexp update.
    m_old = m_sc[...]
    m_new = jnp.maximum(m_old, jnp.max(x, axis=-1, keepdims=True))
    alpha = jnp.exp(m_old - m_new)
    l_sc[...] = alpha * l_sc[...] + jnp.sum(jnp.exp(x - m_new),
                                            axis=-1, keepdims=True)
    m_sc[...] = m_new

    @pl.when(k == pl.num_programs(1) - 1)
    def _():
        loss_ref[...] = (m_sc[...] + jnp.log(l_sc[...])
                         - tgt_sc[...]).astype(loss_ref.dtype)


def per_sample_ce(logits, targets, tile_bytes=_DEFAULT_TILE_BYTES):
    """Per-sample cross-entropy via a tiled, pipelined Pallas kernel.

    logits:  (B, C) float (read in native dtype, cast to f32 in-kernel)
    targets: (B,)   int
    returns: (B,)   float32
    """
    B, C = logits.shape
    itemsize = jnp.dtype(logits.dtype).itemsize
    t2 = targets.astype(jnp.int32).reshape(B, 1)
    out_shape = jax.ShapeDtypeStruct((B, 1), jnp.float32)

    cost = pl.CostEstimate(
        flops=6 * B * C,
        transcendentals=B * C,
        bytes_accessed=B * C * itemsize + 2 * B * 4,
    )

    row_bytes = C * itemsize
    tb_min = min(B, 8)

    if tb_min * row_bytes <= tile_bytes:
        # ------- fast path: single class tile (TC == C), 1-D grid -------
        tb_cap = max(8, (tile_bytes // row_bytes) // 8 * 8)
        if B <= tb_cap:
            if B >= 16:
                # >= 2 batch blocks so "parallel" shards across both v7x TCs.
                TB = min(_round_up(pl.cdiv(B, 2), 8), B)
            else:
                TB = B                     # full dim -> always a legal block
        else:
            TB = tb_cap                    # multiple of 8, >= 2 blocks
        n_b = pl.cdiv(B, TB)

        losses = pl.pallas_call(
            _ce_onepass_kernel,
            out_shape=out_shape,
            grid_spec=pltpu.PrefetchScalarGridSpec(
                num_scalar_prefetch=0,
                grid=(n_b,),
                in_specs=[
                    pl.BlockSpec((TB, C), lambda i: (i, 0)),   # logits tile
                    pl.BlockSpec((TB, 1), lambda i: (i, 0)),   # targets
                ],
                out_specs=pl.BlockSpec((TB, 1), lambda i: (i, 0)),
            ),
            compiler_params=pltpu.CompilerParams(
                dimension_semantics=("parallel",),
                vmem_limit_bytes=_VMEM_LIMIT_BYTES),
            cost_estimate=cost,
        )(logits, t2)
        return losses[:, 0]

    # ------- large-C path: class-tiled streaming online logsumexp -------
    TB = B if B < 128 else 128             # full dim (legal) or multiple of 8
    TC = max(128, (tile_bytes // (TB * itemsize)) // 128 * 128)
    TC = min(TC, _round_up(C, 128))
    n_b = pl.cdiv(B, TB)
    n_c = pl.cdiv(C, TC)
    mask_tail = (C % TC) != 0

    kernel = functools.partial(_ce_streaming_kernel,
                               num_classes=C, tile_c=TC, mask_tail=mask_tail)

    losses = pl.pallas_call(
        kernel,
        out_shape=out_shape,
        grid_spec=pltpu.PrefetchScalarGridSpec(
            num_scalar_prefetch=0,
            grid=(n_b, n_c),
            in_specs=[
                pl.BlockSpec((TB, TC), lambda i, k: (i, k)),   # logits tile
                pl.BlockSpec((TB, 1), lambda i, k: (i, 0)),    # targets
            ],
            out_specs=pl.BlockSpec((TB, 1), lambda i, k: (i, 0)),
            scratch_shapes=[pltpu.VMEM((TB, 1), jnp.float32)] * 3,  # m, l, tgt
        ),
        compiler_params=pltpu.CompilerParams(
            dimension_semantics=("parallel", "arbitrary"),
            vmem_limit_bytes=_VMEM_LIMIT_BYTES),
        cost_estimate=cost,
    )(logits, t2)
    return losses[:, 0]


def hard_mining_loss(logits, targets, save_rate=2):
    """JAX/Pallas equivalent of HardMining.forward."""
    B = logits.shape[0]

    # Single CE pass (per-sample) — Pallas kernel.  CE of the gathered hard
    # rows equals gathering the already-computed per-sample losses, so the
    # second CE pass collapses to mean(top_k(loss)); torch.sum on the scalar
    # is the identity.
    loss = per_sample_ce(logits, targets)                      # (B,)

    num_saved = min(int(save_rate * B), B)                     # PyTorch slice clamps
    if num_saved >= B:
        # Selection is a no-op (default save_rate=2 path): skip the sort.
        return jnp.mean(loss)
    # TODO(synk): save_rate < 1/B -> num_saved == 0 -> mean of empty -> NaN
    # (same as the PyTorch module would produce for an empty selection).
    top_vals, _ = jax.lax.top_k(loss, num_saved)
    return jnp.mean(top_vals)


def _reference_per_sample(logits, targets):
    logp = jax.nn.log_softmax(logits.astype(jnp.float32), axis=-1)
    return -jnp.take_along_axis(
        logp, targets[:, None].astype(jnp.int32), axis=-1)[:, 0]


def _reference(logits, targets, save_rate=2):
    per = _reference_per_sample(logits, targets)
    B = logits.shape[0]
    num_saved = min(int(save_rate * B), B)
    idx = jnp.argsort(-per)[:num_saved]
    return jnp.mean(per[idx])


if __name__ == "__main__":
    key = jax.random.PRNGKey(0)
    k1, k2, k3, k4, k5, k6 = jax.random.split(key, 6)

    # 1) Small shape consistent with the module: batch=8, classes=32.
    #    One-pass path, single batch block, save_rate=2 -> top_k skipped.
    B, C = 8, 32
    logits = jax.random.normal(k1, (B, C), dtype=jnp.float32)
    targets = jax.random.randint(k2, (B,), 0, C, dtype=jnp.int32)
    out = jax.block_until_ready(hard_mining_loss(logits, targets, save_rate=2))
    ref = jax.block_until_ready(_reference(logits, targets, save_rate=2))
    assert jnp.allclose(out, ref, rtol=1e-5, atol=1e-5), (out, ref)

    # 2) One-pass path with a split (partial) batch axis (B=24 -> TB=16, 2
    #    blocks) and real mining (save_rate=0.5 -> top_k of 12).
    B2, C2 = 24, 2500
    logits2 = jax.random.normal(k3, (B2, C2), dtype=jnp.float32)
    targets2 = jax.random.randint(k4, (B2,), 0, C2, dtype=jnp.int32)
    out2 = jax.block_until_ready(hard_mining_loss(logits2, targets2, save_rate=0.5))
    ref2 = jax.block_until_ready(_reference(logits2, targets2, save_rate=0.5))
    assert jnp.allclose(out2, ref2, rtol=1e-4, atol=1e-4), (out2, ref2)

    # 3) Force the streaming online-logsumexp path with a tiny tile budget:
    #    unaligned C (704 -> TC=256, 3 class tiles, masked tail) ...
    B3, C3 = 16, 704
    logits3 = jax.random.normal(k5, (B3, C3), dtype=jnp.float32)
    targets3 = jax.random.randint(k6, (B3,), 0, C3, dtype=jnp.int32)
    per3 = jax.block_until_ready(per_sample_ce(logits3, targets3, tile_bytes=16384))
    ref3 = jax.block_until_ready(_reference_per_sample(logits3, targets3))
    assert jnp.allclose(per3, ref3, rtol=1e-4, atol=1e-4), (per3, ref3)

    #    ... and an aligned-C streaming case (768 % 256 == 0, no tail mask).
    B4, C4 = 16, 768
    logits4 = jax.random.normal(k5, (B4, C4), dtype=jnp.float32)
    targets4 = jax.random.randint(k6, (B4,), 0, C4, dtype=jnp.int32)
    per4 = jax.block_until_ready(per_sample_ce(logits4, targets4, tile_bytes=16384))
    ref4 = jax.block_until_ready(_reference_per_sample(logits4, targets4))
    assert jnp.allclose(per4, ref4, rtol=1e-4, atol=1e-4), (per4, ref4)

    print("KERNEL_OK")
</pallas_src>

<mosaic_0001>
module attributes {stable_mosaic.version = 11 : i64} {
  func.func @_ce_onepass_kernel(%arg0: i32, %arg1: memref<8x32xf32, #tpu.memory_space<vmem>>, %arg2: memref<8x1xi32, #tpu.memory_space<vmem>>, %arg3: memref<8x1xf32, #tpu.memory_space<vmem>>) attributes {dimension_semantics = [#tpu.dimension_semantics<parallel>], iteration_bounds = array<i64: 1>, scalar_prefetch = 0 : i64, scratch_operands = 0 : i64, tpu.core_type = #tpu.core_type<tc>, window_params = [{transform_indices = @transform_0, window_bounds = array<i64: 8, 32>}, {transform_indices = @transform_1, window_bounds = array<i64: 8, 1>}, {transform_indices = @transform_2, window_bounds = array<i64: 8, 1>}]} {
    %c0 = arith.constant 0 : index
    %c0_0 = arith.constant 0 : index
    %0 = vector.load %arg1[%c0, %c0_0] : memref<8x32xf32, #tpu.memory_space<vmem>>, vector<8x32xf32>
    %c0_1 = arith.constant 0 : index
    %c0_2 = arith.constant 0 : index
    %1 = vector.load %arg2[%c0_1, %c0_2] : memref<8x1xi32, #tpu.memory_space<vmem>>, vector<8x1xi32>
    %2 = tpu.iota {dimensions = array<i32: 1>} : vector<8x32xi32>
    %cst = arith.constant dense<0xFF800000> : vector<8xf32>
    %3 = vector.multi_reduction <maximumf>, %0, %cst [1] : vector<8x32xf32> to vector<8xf32>
    %4 = vector.shape_cast %3 : vector<8xf32> to vector<8x1xf32>
    %5 = vector.broadcast %4 : vector<8x1xf32> to vector<8x32xf32>
    %6 = arith.subf %0, %5 : vector<8x32xf32>
    %7 = math.exp %6 : vector<8x32xf32>
    %cst_3 = arith.constant dense<0.000000e+00> : vector<8xf32>
    %8 = vector.multi_reduction <add>, %7, %cst_3 [1] : vector<8x32xf32> to vector<8xf32>
    %9 = vector.shape_cast %8 : vector<8xf32> to vector<8x1xf32>
    %10 = vector.broadcast %1 : vector<8x1xi32> to vector<8x32xi32>
    %11 = arith.cmpi eq, %2, %10 : vector<8x32xi32>
    %cst_4 = arith.constant 0.000000e+00 : f32
    %12 = vector.broadcast %cst_4 : f32 to vector<8x32xf32>
    %13 = arith.select %11, %0, %12 : vector<8x32xi1>, vector<8x32xf32>
    %cst_5 = arith.constant dense<0.000000e+00> : vector<8xf32>
    %14 = vector.multi_reduction <add>, %13, %cst_5 [1] : vector<8x32xf32> to vector<8xf32>
    %15 = vector.shape_cast %14 : vector<8xf32> to vector<8x1xf32>
    %16 = math.log %9 : vector<8x1xf32>
    %17 = arith.addf %4, %16 : vector<8x1xf32>
    %18 = arith.subf %17, %15 : vector<8x1xf32>
    %c0_6 = arith.constant 0 : index
    %c0_7 = arith.constant 0 : index
    %19 = vector.load %arg3[%c0_6, %c0_7] : memref<8x1xf32, #tpu.memory_space<vmem>>, vector<8x1xf32>
    tpu.vector_store %arg3[%c0_6, %c0_7], %18 {strides = array<i32>} : memref<8x1xf32, #tpu.memory_space<vmem>>, vector<8x1xf32>,
    return
  }
  func.func @transform_0(%arg0: i32) -> (i32, i32) {
    %c0_i32 = arith.constant 0 : i32
    %c0_i32_0 = arith.constant 0 : i32
    return %arg0, %c0_i32 : i32, i32
  }
  func.func @transform_1(%arg0: i32) -> (i32, i32) {
    %c0_i32 = arith.constant 0 : i32
    %c0_i32_0 = arith.constant 0 : i32
    return %arg0, %c0_i32 : i32, i32
  }
  func.func @transform_2(%arg0: i32) -> (i32, i32) {
    %c0_i32 = arith.constant 0 : i32
    %c0_i32_0 = arith.constant 0 : i32
    return %arg0, %c0_i32 : i32, i32
  }
}

</mosaic_0001>

<llo_original>
// kernel: tpu_custom_call.1
$region0: #{tpu_custom_call.1}
  #allocation0 [shape = 'u32[]', space=smem, size = 0x4, offset = 0x4, fixed_abs, tag = 'smem constant byte address 0x4 - core index']
  #allocation1 [shape = 'u32[144,128]{1,0:T(1,128)}', space=vmem, size = 0x12000, scoped, tag = 'internal scratch']
  %s0 = inlined_call_operand.vmem [shape: f32[8,32], index: 0, kind: input, shape index: {}]
  %s1 = inlined_call_operand.vmem [shape: s32[8,1], index: 1, kind: input, shape index: {}]
  %s2 = inlined_call_operand.vmem [shape: f32[8,1], index: 2, kind: output, shape index: {}]
  %s3 = sld [smem:[#allocation0]]
  $region18: #{tpu_custom_call.1} parent=0
    _
  %s5 = ssub.s32 1, %s3
  %s6 = scalar_select 0, %s5, %s3
  // Predicated region
  $region2: #{tpu_custom_call.1} parent=0 // pred_check
    _
  $region3: #{tpu_custom_call.1} parent=0 // pred_check_branch
    %8 = sbr.rel (0) target = $region5
  $region4: #{tpu_custom_call.1} parent=0 // pred_region
    _
  $region5: #{tpu_custom_call.1} parent=0 // pred_fallthru
    _
  // Predicated region
  $region6: #{tpu_custom_call.1} parent=0 // pred_check
    _
  $region7: #{tpu_custom_call.1} parent=0 // pred_check_branch
    %10 = sbr.rel (0) target = $region9
  $region8: #{tpu_custom_call.1} parent=0 // pred_region
    _
  $region9: #{tpu_custom_call.1} parent=0 // pred_fallthru
    _
  %v11 = vld [vmem:[%s0] sm:$0xff]
  %v12 = vld [vmem:[%s1] sm:$0xff]
  %v13 = vlaneseq
  %v14 = vand.u32 %v13, 127
  %vm15 = vcmask 261120
  %v16 = vsel %vm15, %v11, -inf
  %17 = vmax.xlane.f32.xlu0 %v16
  %v18 = vpop.xlane.xlu0 %17
  %v19 = vsub.f32 %v11, %v18
  %v20 = vmul.f32 %v19, 1.442695
  %v21 = vpow.pop %v20
  %v22 = vsel %vm15, %v21, 0.0
  %23 = vadd.xlane.f32.xlu0 %v22
  %v24 = vpop.xlane.xlu0 %23
  %25 = vset.pattern.permute.xlu0 0
  %26 = vperm.xlu0 %25, %v12
  %v27 = vpop.permute.xlu0 %26
  %vm28 = vcmp.eq.s32.totalorder %v14, %v27
  %v29 = vsel %vm28, %v11, 0.0
  %v30 = vsel %vm15, %v29, 0.0
  %31 = vadd.xlane.f32.xlu0 %v30
  %v32 = vpop.xlane.xlu0 %31
  %v33 = vlog2.pop %v24
  %v34 = vmul.f32 %v33, 0.6931472
  %v35 = vadd.f32 %v18, %v34
  %v36 = vsub.f32 %v35, %v32
  %vm37 = vcmask 7168
  %38 = vst.msk [vmem:[%s2] sm:$0xff] %vm37, %v36
  // Predicated region
  $region10: #{tpu_custom_call.1} parent=0 // pred_check
    _
  $region11: #{tpu_custom_call.1} parent=0 // pred_check_branch
    %40 = sbr.rel (0) target = $region13
  $region12: #{tpu_custom_call.1} parent=0 // pred_region
    _
  $region13: #{tpu_custom_call.1} parent=0 // pred_fallthru
    _
  // Predicated region
  $region14: #{tpu_custom_call.1} parent=0 // pred_check
    _
  $region15: #{tpu_custom_call.1} parent=0 // pred_check_branch
    %42 = sbr.rel (0) target = $region17
  $region16: #{tpu_custom_call.1} parent=0 // pred_region
    _
  $region17: #{tpu_custom_call.1} parent=0 // pred_fallthru
    _

</llo_original>
